<compile_context>
chip_gen: v5e
topology: v5e:2x2
jax: 0.10.0
libtpu: 0.0.40
codegen_flags: <defaults>
</compile_context>

<pallas_src>
import numpy as np
import jax
import jax.numpy as jnp
from jax.experimental import pallas as pl
from jax.experimental.pallas import tpu as pltpu

# ---- skimage stain matrices (deterministic constants) -----------------------
RGB_FROM_HED = np.array(
    [[0.65, 0.70, 0.29],
     [0.07, 0.99, 0.11],
     [0.27, 0.57, 0.78]], dtype=np.float64)
HED_FROM_RGB = np.linalg.inv(RGB_FROM_HED)

LOG_ADJUST = float(np.log(1e-6))  # negative constant used by separate/combine_stains

# Fold the scalar scales into the mixing matrices (mathematically identical:
# both scales are applied linearly before any clamp).
M_FWD_S = (HED_FROM_RGB / LOG_ADJUST).astype(np.float32)   # rgb2hed mix, incl. 1/log(1e-6)
M_BWD_S = (RGB_FROM_HED * LOG_ADJUST).astype(np.float32)   # hed2rgb mix, incl. log(1e-6)

# Unscaled copies for the pure-JAX reference.
M_FWD = HED_FROM_RGB.astype(np.float32)
M_BWD = RGB_FROM_HED.astype(np.float32)


def hed_jitter_kernel(params_ref, img_ref, out_ref):
    """params_ref: SMEM (4*B,) = [alpha_H, alpha_E, beta_H, beta_E] per image (flat).
    img_ref / out_ref: VMEM (1, 3, TR, LANE) lane-dense block of image b."""
    base = pl.program_id(0) * 4
    alpha_h = params_ref[base]
    alpha_e = params_ref[base + 1]
    beta_h = params_ref[base + 2]
    beta_e = params_ref[base + 3]

    # Fold the H/E affine jitter into the backward mix, once per block on scalars:
    #   col_j = h'*Mb[0,j] + e'*Mb[1,j] + d*Mb[2,j],  h' = aH*h + bH, e' = aE*e + bE
    #         = h*(aH*Mb[0,j]) + e*(aE*Mb[1,j]) + d*Mb[2,j] + (bH*Mb[0,j] + bE*Mb[1,j])
    c_h = [alpha_h * float(M_BWD_S[0, j]) for j in range(3)]
    c_e = [alpha_e * float(M_BWD_S[1, j]) for j in range(3)]
    bias = [beta_h * float(M_BWD_S[0, j]) + beta_e * float(M_BWD_S[1, j])
            for j in range(3)]

    r = img_ref[0, 0]    # (TR, LANE)
    g = img_ref[0, 1]
    b = img_ref[0, 2]

    # --- rgb2hed (separate_stains), with 1/log(1e-6) folded into M_FWD_S ---
    lr = jnp.log(jnp.maximum(r, 1e-6))
    lg = jnp.log(jnp.maximum(g, 1e-6))
    lb = jnp.log(jnp.maximum(b, 1e-6))

    def fwd(j):
        return jnp.maximum(
            lr * float(M_FWD_S[0, j]) + lg * float(M_FWD_S[1, j]) + lb * float(M_FWD_S[2, j]),
            0.0)

    h, e, d = fwd(0), fwd(1), fwd(2)

    # --- jitter folded into hed2rgb (combine_stains); clip done in log domain ---
    for j in range(3):
        l = h * c_h[j] + e * c_e[j] + d * float(M_BWD_S[2, j]) + bias[j]
        # exp(min(l, 0)) == clip(exp(l), 0, 1): exp >= 0, and min in log domain caps at 1.
        out_ref[0, j] = jnp.exp(jnp.minimum(l, 0.0))


def _choose_layout(n_pixels, batch):
    """Pick (lane, n_pad, rows, tr): lane-dense layout for n_pixels per channel and a
    row tile tr giving ~1 MiB blocks and enough grid steps for pipelining."""
    lane = next((c for c in (1024, 512, 256, 128) if n_pixels % c == 0), None)
    if lane is None:                       # rare: H*W not a multiple of 128 -> pad fallback
        lane = 128
        n_pad = pl.cdiv(n_pixels, lane) * lane
    else:
        n_pad = n_pixels                   # common case: no pad, no output slice
    rows = n_pad // lane

    # ~1 MiB per (1, 3, tr, lane) f32 block; tr a multiple of 8.
    tr = max(8, ((1 << 20) // (3 * lane * 4)) // 8 * 8)
    # Keep >= ~8 total grid steps (>= 4 row steps for small B) so the input/output
    # DMAs pipeline and v7x can shard the parallel axes across both TensorCores.
    min_row_steps = -(-8 // max(batch, 1))
    while tr > 8 and pl.cdiv(rows, tr) < min_row_steps:
        tr = max(8, (tr // 2) // 8 * 8)
    if rows < tr:
        tr = rows                          # block dim == full array dim -> always legal
    return lane, n_pad, rows, tr


def hed_jitter(image, params):
    """image: (B, 3, H, W) float32 in [0, 1]; params: (B, 4) float32
    = [alpha_H, alpha_E, beta_H, beta_E] per image.  Returns (B, 3, H, W) float32."""
    B, C, H, W = image.shape
    assert C == 3
    n = H * W
    lane, n_pad, rows, tr = _choose_layout(n, B)

    flat = image.reshape(B, 3, n)
    if n_pad != n:
        # Fallback only when H*W is not a multiple of 128; padded pixels are sliced off.
        flat = jnp.pad(flat, ((0, 0), (0, 0), (0, n_pad - n)))
    x = flat.reshape(B, 3, rows, lane)

    n_row_blocks = pl.cdiv(rows, tr)       # partial last block: masked store, safe
    params_flat = params.reshape(B * 4).astype(jnp.float32)

    out = pl.pallas_call(
        hed_jitter_kernel,
        out_shape=jax.ShapeDtypeStruct((B, 3, rows, lane), jnp.float32),
        grid=(B, n_row_blocks),
        in_specs=[
            pl.BlockSpec(memory_space=pltpu.SMEM),                      # flat params
            pl.BlockSpec((1, 3, tr, lane), lambda b, r: (b, 0, r, 0)),  # lane-dense tile
        ],
        out_specs=pl.BlockSpec((1, 3, tr, lane), lambda b, r: (b, 0, r, 0)),
        compiler_params=pltpu.CompilerParams(
            dimension_semantics=("parallel", "parallel")),
        cost_estimate=pl.CostEstimate(
            flops=42 * B * n,
            transcendentals=6 * B * n,
            bytes_accessed=2 * B * 3 * n * 4),
    )(params_flat, x)

    out = out.reshape(B, 3, n_pad)
    if n_pad != n:
        out = out[:, :, :n]
    return out.reshape(B, 3, H, W)


# ---- pure-JAX reference (mirrors skimage rgb2hed / hed2rgb exactly) ---------
def hed_jitter_ref(image, params):
    B = image.shape[0]
    img = jnp.transpose(image, (0, 2, 3, 1))                     # (B, H, W, 3)
    od = jnp.log(jnp.maximum(img, 1e-6)) / LOG_ADJUST
    stains = jnp.maximum(od @ jnp.asarray(M_FWD), 0.0)
    a = params[:, :2].reshape(B, 1, 1, 2)
    bt = params[:, 2:].reshape(B, 1, 1, 2)
    he = stains[..., :2] * a + bt
    stains = jnp.concatenate([he, stains[..., 2:]], axis=-1)
    log_rgb = (stains @ jnp.asarray(M_BWD)) * LOG_ADJUST
    rgb = jnp.clip(jnp.exp(log_rgb), 0.0, 1.0)
    return jnp.transpose(rgb, (0, 3, 1, 2))


if __name__ == "__main__":
    key = jax.random.PRNGKey(0)
    k_img, k_a, k_b, k_img2 = jax.random.split(key, 4)

    # Deterministic per-image jitter parameters, drawn like torch.empty(1).uniform_(...)
    alpha_lo, alpha_hi = 0.98, 1.02
    beta_lo, beta_hi = -0.02, 0.02

    # Case 1: batch=2, tiny 16x16 image (single-block path).
    B, C, H, W = 2, 3, 16, 16
    image = jax.random.uniform(k_img, (B, C, H, W), dtype=jnp.float32)
    alphas = jax.random.uniform(k_a, (B, 2), minval=alpha_lo, maxval=alpha_hi)
    betas = jax.random.uniform(k_b, (B, 2), minval=beta_lo, maxval=beta_hi)
    params = jnp.concatenate([alphas, betas], axis=-1).astype(jnp.float32)  # (B, 4)

    out = jax.block_until_ready(hed_jitter(image, params))
    ref = hed_jitter_ref(image, params)
    assert out.shape == (B, C, H, W) and out.dtype == jnp.float32
    np.testing.assert_allclose(np.asarray(out), np.asarray(ref), atol=2e-5, rtol=1e-4)

    # Case 2: B=1, 96x96 -> rows=9, tr=8: exercises the multi-step grid and the
    # masked partial last row-block (no wrapper-side padding).
    image2 = jax.random.uniform(k_img2, (1, 3, 96, 96), dtype=jnp.float32)
    params2 = params[:1]
    out2 = jax.block_until_ready(hed_jitter(image2, params2))
    ref2 = hed_jitter_ref(image2, params2)
    np.testing.assert_allclose(np.asarray(out2), np.asarray(ref2), atol=2e-5, rtol=1e-4)

    # `target` dict is passed through unchanged by the original module (no tensor compute).
    print("KERNEL_OK")
</pallas_src>

<mosaic_0001>
module attributes {stable_mosaic.version = 11 : i64} {
  func.func @hed_jitter_kernel(%arg0: i32, %arg1: i32, %arg2: memref<8xf32, #tpu.memory_space<smem>>, %arg3: memref<1x3x1x256xf32, #tpu.memory_space<vmem>>, %arg4: memref<1x3x1x256xf32, #tpu.memory_space<vmem>>) attributes {dimension_semantics = [#tpu.dimension_semantics<parallel>, #tpu.dimension_semantics<parallel>], iteration_bounds = array<i64: 2, 1>, scalar_prefetch = 0 : i64, scratch_operands = 0 : i64, tpu.core_type = #tpu.core_type<tc>, window_params = [{transform_indices = @transform_0, window_bounds = array<i64: 8>}, {transform_indices = @transform_1, window_bounds = array<i64: 1, 3, 1, 256>}, {transform_indices = @transform_2, window_bounds = array<i64: 1, 3, 1, 256>}]} {
    %c4_i32 = arith.constant 4 : i32
    %0 = arith.muli %arg0, %c4_i32 : i32
    %1 = arith.index_cast %0 : i32 to index
    %2 = memref.load %arg2[%1] : memref<8xf32, #tpu.memory_space<smem>>
    %c1_i32 = arith.constant 1 : i32
    %3 = arith.addi %0, %c1_i32 : i32
    %4 = arith.index_cast %3 : i32 to index
    %5 = memref.load %arg2[%4] : memref<8xf32, #tpu.memory_space<smem>>
    %c2_i32 = arith.constant 2 : i32
    %6 = arith.addi %0, %c2_i32 : i32
    %7 = arith.index_cast %6 : i32 to index
    %8 = memref.load %arg2[%7] : memref<8xf32, #tpu.memory_space<smem>>
    %c3_i32 = arith.constant 3 : i32
    %9 = arith.addi %0, %c3_i32 : i32
    %10 = arith.index_cast %9 : i32 to index
    %11 = memref.load %arg2[%10] : memref<8xf32, #tpu.memory_space<smem>>
    %cst = arith.constant -8.98008155 : f32
    %12 = arith.mulf %2, %cst : f32
    %cst_0 = arith.constant -9.67085742 : f32
    %13 = arith.mulf %2, %cst_0 : f32
    %cst_1 = arith.constant -4.00649786 : f32
    %14 = arith.mulf %2, %cst_1 : f32
    %cst_2 = arith.constant -0.967085719 : f32
    %15 = arith.mulf %5, %cst_2 : f32
    %cst_3 = arith.constant -13.6773558 : f32
    %16 = arith.mulf %5, %cst_3 : f32
    %cst_4 = arith.constant -1.51970613 : f32
    %17 = arith.mulf %5, %cst_4 : f32
    %cst_5 = arith.constant -8.98008155 : f32
    %18 = arith.mulf %8, %cst_5 : f32
    %cst_6 = arith.constant -0.967085719 : f32
    %19 = arith.mulf %11, %cst_6 : f32
    %20 = arith.addf %18, %19 : f32
    %cst_7 = arith.constant -9.67085742 : f32
    %21 = arith.mulf %8, %cst_7 : f32
    %cst_8 = arith.constant -13.6773558 : f32
    %22 = arith.mulf %11, %cst_8 : f32
    %23 = arith.addf %21, %22 : f32
    %cst_9 = arith.constant -4.00649786 : f32
    %24 = arith.mulf %8, %cst_9 : f32
    %cst_10 = arith.constant -1.51970613 : f32
    %25 = arith.mulf %11, %cst_10 : f32
    %26 = arith.addf %24, %25 : f32
    %c0 = arith.constant 0 : index
    %c0_11 = arith.constant 0 : index
    %c0_12 = arith.constant 0 : index
    %c0_13 = arith.constant 0 : index
    %27 = vector.load %arg3[%c0, %c0_11, %c0_12, %c0_13] : memref<1x3x1x256xf32, #tpu.memory_space<vmem>>, vector<1x1x1x256xf32>
    %28 = vector.shape_cast %27 : vector<1x1x1x256xf32> to vector<1x256xf32>
    %c0_14 = arith.constant 0 : index
    %c1 = arith.constant 1 : index
    %c0_15 = arith.constant 0 : index
    %c0_16 = arith.constant 0 : index
    %29 = vector.load %arg3[%c0_14, %c1, %c0_15, %c0_16] : memref<1x3x1x256xf32, #tpu.memory_space<vmem>>, vector<1x1x1x256xf32>
    %30 = vector.shape_cast %29 : vector<1x1x1x256xf32> to vector<1x256xf32>
    %c0_17 = arith.constant 0 : index
    %c2 = arith.constant 2 : index
    %c0_18 = arith.constant 0 : index
    %c0_19 = arith.constant 0 : index
    %31 = vector.load %arg3[%c0_17, %c2, %c0_18, %c0_19] : memref<1x3x1x256xf32, #tpu.memory_space<vmem>>, vector<1x1x1x256xf32>
    %32 = vector.shape_cast %31 : vector<1x1x1x256xf32> to vector<1x256xf32>
    %cst_20 = arith.constant 9.99999997E-7 : f32
    %33 = vector.broadcast %cst_20 : f32 to vector<1x256xf32>
    %34 = arith.maximumf %28, %33 : vector<1x256xf32>
    %35 = math.log %34 : vector<1x256xf32>
    %cst_21 = arith.constant 9.99999997E-7 : f32
    %36 = vector.broadcast %cst_21 : f32 to vector<1x256xf32>
    %37 = arith.maximumf %30, %36 : vector<1x256xf32>
    %38 = math.log %37 : vector<1x256xf32>
    %cst_22 = arith.constant 9.99999997E-7 : f32
    %39 = vector.broadcast %cst_22 : f32 to vector<1x256xf32>
    %40 = arith.maximumf %32, %39 : vector<1x256xf32>
    %41 = math.log %40 : vector<1x256xf32>
    %cst_23 = arith.constant -0.135932922 : f32
    %42 = vector.broadcast %cst_23 : f32 to vector<1x256xf32>
    %43 = arith.mulf %35, %42 : vector<1x256xf32>
    %cst_24 = arith.constant 0.0047705844 : f32
    %44 = vector.broadcast %cst_24 : f32 to vector<1x256xf32>
    %45 = arith.mulf %38, %44 : vector<1x256xf32>
    %46 = arith.addf %43, %45 : vector<1x256xf32>
    %cst_25 = arith.constant 0.0435675085 : f32
    %47 = vector.broadcast %cst_25 : f32 to vector<1x256xf32>
    %48 = arith.mulf %41, %47 : vector<1x256xf32>
    %49 = arith.addf %46, %48 : vector<1x256xf32>
    %cst_26 = arith.constant 0.000000e+00 : f32
    %50 = vector.broadcast %cst_26 : f32 to vector<1x256xf32>
    %51 = arith.maximumf %49, %50 : vector<1x256xf32>
    %cst_27 = arith.constant 0.0729382187 : f32
    %52 = vector.broadcast %cst_27 : f32 to vector<1x256xf32>
    %53 = arith.mulf %35, %52 : vector<1x256xf32>
    %cst_28 = arith.constant -0.0821345224 : f32
    %54 = vector.broadcast %cst_28 : f32 to vector<1x256xf32>
    %55 = arith.mulf %38, %54 : vector<1x256xf32>
    %56 = arith.addf %53, %55 : vector<1x256xf32>
    %cst_29 = arith.constant 0.0347735398 : f32
    %57 = vector.broadcast %cst_29 : f32 to vector<1x256xf32>
    %58 = arith.mulf %41, %57 : vector<1x256xf32>
    %59 = arith.addf %56, %58 : vector<1x256xf32>
    %cst_30 = arith.constant 0.000000e+00 : f32
    %60 = vector.broadcast %cst_30 : f32 to vector<1x256xf32>
    %61 = arith.maximumf %59, %60 : vector<1x256xf32>
    %cst_31 = arith.constant 0.0402530059 : f32
    %62 = vector.broadcast %cst_31 : f32 to vector<1x256xf32>
    %63 = arith.mulf %35, %62 : vector<1x256xf32>
    %cst_32 = arith.constant 0.00980939529 : f32
    %64 = vector.broadcast %cst_32 : f32 to vector<1x256xf32>
    %65 = arith.mulf %38, %64 : vector<1x256xf32>
    %66 = arith.addf %63, %65 : vector<1x256xf32>
    %cst_33 = arith.constant -0.113900103 : f32
    %67 = vector.broadcast %cst_33 : f32 to vector<1x256xf32>
    %68 = arith.mulf %41, %67 : vector<1x256xf32>
    %69 = arith.addf %66, %68 : vector<1x256xf32>
    %cst_34 = arith.constant 0.000000e+00 : f32
    %70 = vector.broadcast %cst_34 : f32 to vector<1x256xf32>
    %71 = arith.maximumf %69, %70 : vector<1x256xf32>
    %72 = vector.broadcast %12 : f32 to vector<1x256xf32>
    %73 = arith.mulf %51, %72 : vector<1x256xf32>
    %74 = vector.broadcast %15 : f32 to vector<1x256xf32>
    %75 = arith.mulf %61, %74 : vector<1x256xf32>
    %76 = arith.addf %73, %75 : vector<1x256xf32>
    %cst_35 = arith.constant -3.73018789 : f32
    %77 = vector.broadcast %cst_35 : f32 to vector<1x256xf32>
    %78 = arith.mulf %71, %77 : vector<1x256xf32>
    %79 = arith.addf %76, %78 : vector<1x256xf32>
    %80 = vector.broadcast %20 : f32 to vector<1x256xf32>
    %81 = arith.addf %79, %80 : vector<1x256xf32>
    %cst_36 = arith.constant 0.000000e+00 : f32
    %82 = vector.broadcast %cst_36 : f32 to vector<1x256xf32>
    %83 = arith.minimumf %81, %82 : vector<1x256xf32>
    %84 = math.exp %83 : vector<1x256xf32>
    %c0_37 = arith.constant 0 : index
    %c0_38 = arith.constant 0 : index
    %c0_39 = arith.constant 0 : index
    %c0_40 = arith.constant 0 : index
    %85 = vector.load %arg4[%c0_37, %c0_38, %c0_39, %c0_40] : memref<1x3x1x256xf32, #tpu.memory_space<vmem>>, vector<1x1x1x256xf32>
    %86 = vector.shape_cast %85 : vector<1x1x1x256xf32> to vector<1x256xf32>
    %87 = vector.shape_cast %84 : vector<1x256xf32> to vector<1x1x1x256xf32>
    tpu.vector_store %arg4[%c0_37, %c0_38, %c0_39, %c0_40], %87 {strides = array<i32>} : memref<1x3x1x256xf32, #tpu.memory_space<vmem>>, vector<1x1x1x256xf32>,
    %88 = vector.broadcast %13 : f32 to vector<1x256xf32>
    %89 = arith.mulf %51, %88 : vector<1x256xf32>
    %90 = vector.broadcast %16 : f32 to vector<1x256xf32>
    %91 = arith.mulf %61, %90 : vector<1x256xf32>
    %92 = arith.addf %89, %91 : vector<1x256xf32>
    %cst_41 = arith.constant -7.87484121 : f32
    %93 = vector.broadcast %cst_41 : f32 to vector<1x256xf32>
    %94 = arith.mulf %71, %93 : vector<1x256xf32>
    %95 = arith.addf %92, %94 : vector<1x256xf32>
    %96 = vector.broadcast %23 : f32 to vector<1x256xf32>
    %97 = arith.addf %95, %96 : vector<1x256xf32>
    %cst_42 = arith.constant 0.000000e+00 : f32
    %98 = vector.broadcast %cst_42 : f32 to vector<1x256xf32>
    %99 = arith.minimumf %97, %98 : vector<1x256xf32>
    %100 = math.exp %99 : vector<1x256xf32>
    %c0_43 = arith.constant 0 : index
    %c1_44 = arith.constant 1 : index
    %c0_45 = arith.constant 0 : index
    %c0_46 = arith.constant 0 : index
    %101 = vector.load %arg4[%c0_43, %c1_44, %c0_45, %c0_46] : memref<1x3x1x256xf32, #tpu.memory_space<vmem>>, vector<1x1x1x256xf32>
    %102 = vector.shape_cast %101 : vector<1x1x1x256xf32> to vector<1x256xf32>
    %103 = vector.shape_cast %100 : vector<1x256xf32> to vector<1x1x1x256xf32>
    tpu.vector_store %arg4[%c0_43, %c1_44, %c0_45, %c0_46], %103 {strides = array<i32>} : memref<1x3x1x256xf32, #tpu.memory_space<vmem>>, vector<1x1x1x256xf32>,
    %104 = vector.broadcast %14 : f32 to vector<1x256xf32>
    %105 = arith.mulf %51, %104 : vector<1x256xf32>
    %106 = vector.broadcast %17 : f32 to vector<1x256xf32>
    %107 = arith.mulf %61, %106 : vector<1x256xf32>
    %108 = arith.addf %105, %107 : vector<1x256xf32>
    %cst_47 = arith.constant -10.7760983 : f32
    %109 = vector.broadcast %cst_47 : f32 to vector<1x256xf32>
    %110 = arith.mulf %71, %109 : vector<1x256xf32>
    %111 = arith.addf %108, %110 : vector<1x256xf32>
    %112 = vector.broadcast %26 : f32 to vector<1x256xf32>
    %113 = arith.addf %111, %112 : vector<1x256xf32>
    %cst_48 = arith.constant 0.000000e+00 : f32
    %114 = vector.broadcast %cst_48 : f32 to vector<1x256xf32>
    %115 = arith.minimumf %113, %114 : vector<1x256xf32>
    %116 = math.exp %115 : vector<1x256xf32>
    %c0_49 = arith.constant 0 : index
    %c2_50 = arith.constant 2 : index
    %c0_51 = arith.constant 0 : index
    %c0_52 = arith.constant 0 : index
    %117 = vector.load %arg4[%c0_49, %c2_50, %c0_51, %c0_52] : memref<1x3x1x256xf32, #tpu.memory_space<vmem>>, vector<1x1x1x256xf32>
    %118 = vector.shape_cast %117 : vector<1x1x1x256xf32> to vector<1x256xf32>
    %119 = vector.shape_cast %116 : vector<1x256xf32> to vector<1x1x1x256xf32>
    tpu.vector_store %arg4[%c0_49, %c2_50, %c0_51, %c0_52], %119 {strides = array<i32>} : memref<1x3x1x256xf32, #tpu.memory_space<vmem>>, vector<1x1x1x256xf32>,
    return
  }
  func.func @transform_0(%arg0: i32, %arg1: i32) -> i32 {
    %c0_i32 = arith.constant 0 : i32
    %c0_i32_0 = arith.constant 0 : i32
    return %c0_i32 : i32
  }
  func.func @transform_1(%arg0: i32, %arg1: i32) -> (i32, i32, i32, i32) {
    %c0_i32 = arith.constant 0 : i32
    %c0_i32_0 = arith.constant 0 : i32
    %c0_i32_1 = arith.constant 0 : i32
    return %arg0, %c0_i32, %arg1, %c0_i32_0 : i32, i32, i32, i32
  }
  func.func @transform_2(%arg0: i32, %arg1: i32) -> (i32, i32, i32, i32) {
    %c0_i32 = arith.constant 0 : i32
    %c0_i32_0 = arith.constant 0 : i32
    %c0_i32_1 = arith.constant 0 : i32
    return %arg0, %c0_i32, %arg1, %c0_i32_0 : i32, i32, i32, i32
  }
}

</mosaic_0001>

<llo_original>
// kernel: tpu_custom_call.1
$region0: #{tpu_custom_call.1}
  #allocation0 [shape = 'u32[]', space=smem, size = 0x4, offset = 0x4, fixed_abs, tag = 'smem constant byte address 0x4 - core index']
  #allocation1 [shape = 'u32[72,128]{1,0:T(1,128)}', space=vmem, size = 0x9000, scoped, tag = 'internal scratch']
  %s0 = inlined_call_operand.hbm [shape: f32[8], index: 0, kind: input, shape index: {}]
  %s1 = inlined_call_operand.hbm [shape: f32[2,3,1,256], index: 1, kind: input, shape index: {}]
  %s2 = inlined_call_operand.hbm [shape: f32[2,3,1,256], index: 2, kind: output, shape index: {}]
  %s3 = sld [smem:[#allocation0]]
  $region49: #{tpu_custom_call.1} parent=0
    _
  %s5 = ssub.s32 1, %s3
  %s6 = scalar_select 0, %s5, %s3
  $region1: #{tpu_custom_call.1} parent=0
    #allocation2 [shape = 'u8[512]{0}', space=smem, size = 0x200, scoped, tag = 'input window, operand 0, single buffered']
    #allocation3 [shape = 's32[2]{0}', space=sflag, size = 0x8, scoped, tag = 'scoped memory for tpu_custom_call.1']
    #allocation4 [shape = 's32[2]{0}', space=sflag, size = 0x8, scoped, tag = 'scoped memory for tpu_custom_call.1']
    #allocation5 [shape = 's32[2]{0}', space=sflag, size = 0x8, scoped, tag = 'scoped memory for tpu_custom_call.1']
    #allocation6 [shape = 'u8[6144]{0}', space=vmem, size = 0x1800, scoped, tag = 'input window, operand 1']
    #allocation7 [shape = 'u8[6144]{0}', space=vmem, size = 0x1800, scoped, tag = 'output window, operand 0']
    %7 = vsyncpa [#allocation5], 0
    %8 = vsyncpa [#allocation3], 0
    %s9 = scalar_lea.sflag [#allocation3], 1
    %10 = vsyncpa %s9, 0
    %11 = vsyncpa [#allocation4], 0
    %s12 = scalar_lea.sflag [#allocation4], 1
    %13 = vsyncpa %s12, 0
    loop: start=0, step=1, limit=4
    $region2: #{tpu_custom_call.1} parent=1 // loop_pre_header
      _
    $region3: #{tpu_custom_call.1} parent=1 // loop_header
      %s15 = sphi 0, %s19
      %p16 = scmp.ge.s32.totalorder %s15, 4
      %s22 = sphi 0, %s34
      %s23 = sphi 0, %s30
      %s24 = sphi 0, %s22
      %s25 = sphi 0, %s23
      %s26 = sphi 0, %s24
      %s27 = sphi 0, %s25
      %s35 = sphi 0, %s35
      %s37 = sphi 0, %s35
      %s38 = sphi 0, %s37
      %s52 = sphi 0, %s38
      %s60 = sphi 0, %s62
      %s63 = sphi 0, %s60
      %s64 = sphi 0, %s63
      %s80 = sphi 0, %s64
      %s88 = sphi 0, %s90
      %s91 = sphi 0, %s88
      %s92 = sphi 0, %s91
      %s108 = sphi 0, %s92
    $region4: #{tpu_custom_call.1} parent=1 // loop_header_branch
      %18 = sbr.rel (%p16) target = $region8
    $region5: #{tpu_custom_call.1} parent=1 // loop_body
      %s20 = ssub.s32 %s15, 1
      %s21 = ssub.s32 %s15, 2
      %s28 = sadd.s32 1, %s23
      %p29 = scmp.ge.s32.totalorder %s28, 1
      %s30 = scalar_select %p29, 0, %s28
      %s31 = sadd.s32 1, %s22
      %s32 = scalar_select %p29, %s31, %s22
      %p33 = scmp.ge.s32.totalorder %s32, 2
      %s34 = scalar_select %p33, 0, %s32
      %s36 = sadd.s32 %s35, 1
      %p39 = scmp.eq.s32.totalorder %s15, 1
      %p40 = scmp.ne.s32.totalorder %s35, %s37
      %p41 = scmp.eq.s32.totalorder %s15, 0
      %p42 = por %p40, %p41
      %p43 = scmp.ne.s32.totalorder %s35, %s37
      %p44 = scmp.eq.s32.totalorder %s20, 1
      %p45 = por %p43, %p44
      %p46 = scmp.ne.s32.totalorder %s37, %s38
      %p47 = scmp.eq.s32.totalorder %s20, 0
      %p48 = por %p46, %p47
      %p49 = scmp.ne.s32.totalorder %s37, %s38
      %p50 = scmp.eq.s32.totalorder %s21, 1
      %p51 = por %p49, %p50
      %p53 = scmp.ne.s32.totalorder %s38, %s52
      %p54 = scmp.eq.s32.totalorder %s21, 0
      %p55 = por %p53, %p54
      %s56 = ssub.s32 %s22, %s34
      %s57 = ssub.s32 %s23, %s30
      %s58 = sor.u32 %s56, %s57
      %p59 = scmp.eq.s32.totalorder %s58, 0
      %s61 = sadd.s32 %s60, 1
      %s62 = scalar_select %p59, %s60, %s61
      %p65 = pneg %p59
      %p66 = scmp.eq.s32.totalorder %s15, 1
      %p67 = por %p65, %p66
      %p68 = scmp.ne.s32.totalorder %s60, %s63
      %p69 = scmp.eq.s32.totalorder %s15, 0
      %p70 = por %p68, %p69
      %p71 = scmp.ne.s32.totalorder %s60, %s63
      %p72 = scmp.eq.s32.totalorder %s20, 1
      %p73 = por %p71, %p72
      %p74 = scmp.ne.s32.totalorder %s63, %s64
      %p75 = scmp.eq.s32.totalorder %s20, 0
      %p76 = por %p74, %p75
      %p77 = scmp.ne.s32.totalorder %s63, %s64
      %p78 = scmp.eq.s32.totalorder %s21, 1
      %p79 = por %p77, %p78
      %p81 = scmp.ne.s32.totalorder %s64, %s80
      %p82 = scmp.eq.s32.totalorder %s21, 0
      %p83 = por %p81, %p82
      %s84 = ssub.s32 %s22, %s34
      %s85 = ssub.s32 %s23, %s30
      %s86 = sor.u32 %s84, %s85
      %p87 = scmp.eq.s32.totalorder %s86, 0
      %s89 = sadd.s32 %s88, 1
      %s90 = scalar_select %p87, %s88, %s89
      %p93 = pneg %p87
      %p94 = scmp.eq.s32.totalorder %s15, 1
      %p95 = por %p93, %p94
      %p96 = scmp.ne.s32.totalorder %s88, %s91
      %p97 = scmp.eq.s32.totalorder %s15, 0
      %p98 = por %p96, %p97
      %p99 = scmp.ne.s32.totalorder %s88, %s91
      %p100 = scmp.eq.s32.totalorder %s20, 1
      %p101 = por %p99, %p100
      %p102 = scmp.ne.s32.totalorder %s91, %s92
      %p103 = scmp.eq.s32.totalorder %s20, 0
      %p104 = por %p102, %p103
      %p105 = scmp.ne.s32.totalorder %s91, %s92
      %p106 = scmp.eq.s32.totalorder %s21, 1
      %p107 = por %p105, %p106
      %p109 = scmp.ne.s32.totalorder %s92, %s108
      %p110 = scmp.eq.s32.totalorder %s21, 0
      %p111 = por %p109, %p110
      %p112 = scmp.le.s32.totalorder 1, %s15
      %p113 = scmp.lt.s32.totalorder %s15, 3
      %p114 = pnand %p112, %p113
      %p115 = pneg %p114
      // Predicated region
      $region9: #{tpu_custom_call.1} parent=5 // pred_check
        _
      $region10: #{tpu_custom_call.1} parent=5 // pred_check_branch
        %117 = sbr.rel (%p114) target = $region12
      $region11: #{tpu_custom_call.1} parent=5 // pred_region
        %s118 = ssub.s32 %s15, 1
        // Predicated region
        $region13: #{tpu_custom_call.1} parent=11 // pred_check
          %p119 = pneg %p48
        $region14: #{tpu_custom_call.1} parent=11 // pred_check_branch
          %121 = sbr.rel (%p119) target = $region16
        $region15: #{tpu_custom_call.1} parent=11 // pred_region
          %123 = vsyncadd [#allocation5], 0
          %s125 = sshll.u32 %s0, 4
          %s126 = int_to_ptr.hbm [resolvable:$true] %s125
          %128 = dma.hbm_to_smem %s126, 16, [#allocation2], [#allocation5]
        $region16: #{tpu_custom_call.1} parent=11 // pred_fallthru
          _
      $region12: #{tpu_custom_call.1} parent=5 // pred_fallthru
        _
      %p129 = scmp.lt.s32.totalorder %s15, 2
      // Predicated region
      $region17: #{tpu_custom_call.1} parent=5 // pred_check
        %p130 = pneg %p129
      $region18: #{tpu_custom_call.1} parent=5 // pred_check_branch
        %132 = sbr.rel (%p130) target = $region20
      $region19: #{tpu_custom_call.1} parent=5 // pred_region
        // Predicated region
        $region21: #{tpu_custom_call.1} parent=19 // pred_check
          %p133 = pneg %p70
        $region22: #{tpu_custom_call.1} parent=19 // pred_check_branch
          %135 = sbr.rel (%p133) target = $region24
        $region23: #{tpu_custom_call.1} parent=19 // pred_region
          %s136 = sand.u32 %s60, 1
          %s137 = scalar_lea.sflag [#allocation3], %s136
          %s138 = sand.u32 %s60, 1
          %s139 = smul.addr %s138, 6
          %s140 = scalar_lea.vmem [#allocation6], %s139
          %142 = vsyncadd %s137, 0
          %s143 = smul.addr %s23, 2
          %s144 = smul.addr %s22, 6
          %s145 = sadd.s32 %s143, %s144
          %s146 = scalar_lea.hbm %s1, %s145
          %s147 = sshll.u32 %s146, 4
          %s148 = int_to_ptr.hbm [resolvable:$true] %s147
          %s149 = sshll.u32 %s140, 4
          %s150 = int_to_ptr.vmem [resolvable:$true] %s149
          %155 = dma.hbm_to_vmem [thread:$0]  %s148, 96, %s150, %s137, 32, 32, 2
        $region24: #{tpu_custom_call.1} parent=19 // pred_fallthru
          _
      $region20: #{tpu_custom_call.1} parent=5 // pred_fallthru
        _
      %p156 = scmp.le.s32.totalorder 1, %s15
      %p157 = scmp.lt.s32.totalorder %s15, 3
      %p158 = pnand %p156, %p157
      %p159 = pneg %p158
      // Predicated region
      $region25: #{tpu_custom_call.1} parent=5 // pred_check
        _
      $region26: #{tpu_custom_call.1} parent=5 // pred_check_branch
        %161 = sbr.rel (%p158) target = $region28
      $region27: #{tpu_custom_call.1} parent=5 // pred_region
        %s162 = ssub.s32 %s15, 1
        // Predicated region
        $region29: #{tpu_custom_call.1} parent=27 // pred_check
          %p163 = pneg %p48
        $region30: #{tpu_custom_call.1} parent=27 // pred_check_branch
          %165 = sbr.rel (%p163) target = $region32
        $region31: #{tpu_custom_call.1} parent=27 // pred_region
          %167 = dma.done [#allocation5], 16
        $region32: #{tpu_custom_call.1} parent=27 // pred_fallthru
          _
        %s168 = sand.u32 %s63, 1
        %s169 = scalar_lea.sflag [#allocation3], %s168
        %s170 = sand.u32 %s63, 1
        %s171 = smul.addr %s170, 6
        %s172 = scalar_lea.vmem [#allocation6], %s171
        // Predicated region
        $region33: #{tpu_custom_call.1} parent=27 // pred_check
          %p173 = pneg %p76
        $region34: #{tpu_custom_call.1} parent=27 // pred_check_branch
          %175 = sbr.rel (%p173) target = $region36
        $region35: #{tpu_custom_call.1} parent=27 // pred_region
          %177 = dma.done %s169, 96
        $region36: #{tpu_custom_call.1} parent=27 // pred_fallthru
          _
        %178 = sfence
        %p179 = pneg %p48
        %p180 = pneg %p45
        %s181 = sand.u32 %s63, 1
        %s182 = scalar_lea.sflag [#allocation3], %s181
        %s183 = sand.u32 %s63, 1
        %s184 = smul.addr %s183, 6
        %s185 = scalar_lea.vmem [#allocation6], %s184
        %p186 = pneg %p76
        %p187 = pneg %p73
        %p188 = pneg %p104
        %p189 = pneg %p101
        %s190 = sand.u32 %s91, 1
        %s191 = scalar_lea.sflag [#allocation4], %s190
        %s192 = sand.u32 %s91, 1
        %s193 = smul.addr %s192, 6
        %s194 = scalar_lea.vmem [#allocation7], %s193
        %s195 = smul.u32 %s24, 4
        %s196 = sld [smem:[#allocation2 + %s195]]
        %s197 = sadd.s32 %s195, 1
        %s198 = sld [smem:[#allocation2 + %s197]]
        %s199 = sadd.s32 %s195, 2
        %s200 = sld [smem:[#allocation2 + %s199]]
        %s201 = sadd.s32 %s195, 3
        %s202 = sld [smem:[#allocation2 + %s201]]
        %s203 = smul.f32 %s196, -8.980082
        %s204 = smul.f32 %s196, -9.670857
        %s205 = smul.f32 %s196, -4.006498
        %s206 = smul.f32 %s198, -0.9670857
        %s207 = smul.f32 %s198, -13.677356
        %s208 = smul.f32 %s198, -1.5197061
        %s209 = smul.f32 %s200, -8.980082
        %s210 = smul.f32 %s202, -0.9670857
        %s211 = sadd.f32 %s209, %s210
        %s212 = smul.f32 %s200, -9.670857
        %s213 = smul.f32 %s202, -13.677356
        %s214 = sadd.f32 %s212, %s213
        %s215 = smul.f32 %s200, -4.006498
        %s216 = smul.f32 %s202, -1.5197061
        %s217 = sadd.f32 %s215, %s216
        %v218 = vld [vmem:[%s172] sm:$0x3]
        %s219 = scalar_lea.vmem %s172, 2 [#allocation6]
        %v220 = vld [vmem:[%s219] sm:$0x3]
        %s221 = scalar_lea.vmem %s172, 4 [#allocation6]
        %v222 = vld [vmem:[%s221] sm:$0x3]
        %v223 = vmax.f32 %v218, 1e-06
        %v224 = vlog2.pop %v223
        %v225 = vmul.f32 %v224, 0.6931472
        %v226 = vmax.f32 %v220, 1e-06
        %v227 = vlog2.pop %v226
        %v228 = vmul.f32 %v227, 0.6931472
        %v229 = vmax.f32 %v222, 1e-06
        %v230 = vlog2.pop %v229
        %v231 = vmul.f32 %v230, 0.6931472
        %v232 = vmul.f32 %v225, -0.13593292
        %v233 = vmul.f32 %v228, 0.0047705844
        %v234 = vadd.f32 %v232, %v233
        %v235 = vmul.f32 %v231, 0.04356751
        %v236 = vadd.f32 %v234, %v235
        %v237 = vmax.f32 %v236, 0.0
        %v238 = vmul.f32 %v225, 0.07293822
        %v239 = vmul.f32 %v228, -0.08213452
        %v240 = vadd.f32 %v238, %v239
        %v241 = vmul.f32 %v231, 0.03477354
        %v242 = vadd.f32 %v240, %v241
        %v243 = vmax.f32 %v242, 0.0
        %v244 = vmul.f32 %v225, 0.040253006
        %v245 = vmul.f32 %v228, 0.009809395
        %v246 = vadd.f32 %v244, %v245
        %v247 = vmul.f32 %v231, -0.1139001
        %v248 = vadd.f32 %v246, %v247
        %v249 = vmax.f32 %v248, 0.0
        %v250 = vstv %s203
        %v251 = vmul.f32 %v237, %v250
        %v252 = vstv %s206
        %v253 = vmul.f32 %v243, %v252
        %v254 = vadd.f32 %v251, %v253
        %v255 = vmul.f32 %v249, -3.730188
        %v256 = vadd.f32 %v254, %v255
        %v257 = vstv %s211
        %v258 = vadd.f32 %v256, %v257
        %v259 = vmin.f32 %v258, 0.0
        %v260 = vmul.f32 %v259, 1.442695
        %v261 = vpow.pop %v260
        %v262 = vlaneseq
        %vm263 = vcmp.ge.s32.totalorder %v262, 0
        %vm264 = vcmp.lt.s32.totalorder %v262, 256
        %vm265 = vmand %vm263, %vm264
        %266 = vst.msk [vmem:[%s194] sm:$0x3] %vm265, %v261
        %v267 = vstv %s204
        %v268 = vmul.f32 %v237, %v267
        %v269 = vstv %s207
        %v270 = vmul.f32 %v243, %v269
        %v271 = vadd.f32 %v268, %v270
        %v272 = vmul.f32 %v249, -7.874841
        %v273 = vadd.f32 %v271, %v272
        %v274 = vstv %s214
        %v275 = vadd.f32 %v273, %v274
        %v276 = vmin.f32 %v275, 0.0
        %v277 = vmul.f32 %v276, 1.442695
        %v278 = vpow.pop %v277
        %s279 = scalar_lea.vmem %s194, 2 [#allocation7]
        %280 = vst.msk [vmem:[%s279] sm:$0x3] %vm265, %v278
        %v281 = vstv %s205
        %v282 = vmul.f32 %v237, %v281
        %v283 = vstv %s208
        %v284 = vmul.f32 %v243, %v283
        %v285 = vadd.f32 %v282, %v284
        %v286 = vmul.f32 %v249, -10.776098
        %v287 = vadd.f32 %v285, %v286
        %v288 = vstv %s217
        %v289 = vadd.f32 %v287, %v288
        %v290 = vmin.f32 %v289, 0.0
        %v291 = vmul.f32 %v290, 1.442695
        %v292 = vpow.pop %v291
        %s293 = scalar_lea.vmem %s194, 4 [#allocation7]
        %294 = vst.msk [vmem:[%s293] sm:$0x3] %vm265, %v292
        %s295 = sand.u32 %s91, 1
        %s296 = scalar_lea.sflag [#allocation4], %s295
        %s297 = sand.u32 %s91, 1
        %s298 = smul.addr %s297, 6
        %s299 = scalar_lea.vmem [#allocation7], %s298
        // Predicated region
        $region37: #{tpu_custom_call.1} parent=27 // pred_check
          %p300 = pneg %p101
        $region38: #{tpu_custom_call.1} parent=27 // pred_check_branch
          %302 = sbr.rel (%p300) target = $region40
        $region39: #{tpu_custom_call.1} parent=27 // pred_region
          %304 = vsyncadd %s296, 0
          %s305 = smul.addr %s25, 2
          %s306 = smul.addr %s24, 6
          %s307 = sadd.s32 %s305, %s306
          %s308 = scalar_lea.hbm %s2, %s307
          %s309 = sshll.u32 %s299, 4
          %s310 = int_to_ptr.vmem [resolvable:$true] %s309
          %s311 = sshll.u32 %s308, 4
          %s312 = int_to_ptr.hbm [resolvable:$true] %s311
          %317 = dma.vmem_to_hbm [thread:$0]  %s310, 96, %s312, %s296, 32, 32, 2
        $region40: #{tpu_custom_call.1} parent=27 // pred_fallthru
          _
      $region28: #{tpu_custom_call.1} parent=5 // pred_fallthru
        _
      %p318 = scmp.le.s32.totalorder 2, %s15
      // Predicated region
      $region41: #{tpu_custom_call.1} parent=5 // pred_check
        %p319 = pneg %p318
      $region42: #{tpu_custom_call.1} parent=5 // pred_check_branch
        %321 = sbr.rel (%p319) target = $region44
      $region43: #{tpu_custom_call.1} parent=5 // pred_region
        %s322 = ssub.s32 %s15, 2
        // Predicated region
        $region45: #{tpu_custom_call.1} parent=43 // pred_check
          %p323 = pneg %p107
        $region46: #{tpu_custom_call.1} parent=43 // pred_check_branch
          %325 = sbr.rel (%p323) target = $region48
        $region47: #{tpu_custom_call.1} parent=43 // pred_region
          %s326 = sand.u32 %s92, 1
          %s327 = scalar_lea.sflag [#allocation4], %s326
          %s328 = sand.u32 %s92, 1
          %s329 = smul.addr %s328, 6
          %s330 = scalar_lea.vmem [#allocation7], %s329
          %332 = dma.done %s327, 96
        $region48: #{tpu_custom_call.1} parent=43 // pred_fallthru
          _
      $region44: #{tpu_custom_call.1} parent=5 // pred_fallthru
        _
    $region6: #{tpu_custom_call.1} parent=1 // loop_footer
      %s19 = sadd.s32 1, %s15
    $region7: #{tpu_custom_call.1} parent=1 // loop_footer_branch
      %14 = sbr.rel target = $region3
    $region8: #{tpu_custom_call.1} parent=1 // loop_exit
      _
    %333 = vsyncpa [#allocation3], 1
    %s334 = scalar_lea.sflag [#allocation3], 1
    %335 = vsyncpa %s334, 1
    %336 = vsyncpa [#allocation4], 1
    %s337 = scalar_lea.sflag [#allocation4], 1
    %338 = vsyncpa %s337, 1
    %339 = vsyncpa [#allocation5], 1
    %s340 = scalar_lea.sflag [#allocation5], 1
    %341 = vsyncpa %s340, 1

</llo_original>
